<compile_context>
chip_gen: v6e
topology: v6e:2x2x1
jax: 0.10.0
libtpu: 0.0.40
codegen_flags: <defaults>
</compile_context>

<pallas_src>
import functools
import math

import jax
import jax.numpy as jnp
import numpy as np
from jax.experimental import pallas as pl
from jax.experimental.pallas import tpu as pltpu


def _vmem_capacity_bytes() -> int:
    """Per-TensorCore VMEM capacity; conservative fallback = v7x (64 MiB)."""
    try:
        info = pltpu.get_tpu_info()
        cap = getattr(info, "vmem_capacity_bytes", None)
        if cap:
            return int(cap)
    except Exception:
        pass
    return 64 * 1024 * 1024


# ------------------------- pass 1: key search ------------------------------ #
def _keysearch_kernel(x_ref, ct_ref, lnw_ref, qmask_ref, cmask_ref,
                      *, threshold, eps):
    """Per row-tile: dots -> LN -> softmax threshold -> per-tile q/c masks.

    x_ref     : (tm_ks, in) bf16 input tile
    ct_ref    : (in, nc)    bf16 expanded centroids, transposed
    lnw_ref   : (1, nc)     f32 layer-norm weight (= sigma)
    qmask_ref : (1, 1, tm_ks) f32 per-row "query selected" mask (lane-dense)
    cmask_ref : (1, 1, nc)    f32 per-tile "cluster selected" partial mask
    """
    dots = jnp.dot(x_ref[...], ct_ref[...],
                   preferred_element_type=jnp.float32)               # (tm, nc)
    mu = jnp.mean(dots, axis=-1, keepdims=True)
    var = jnp.mean(jnp.square(dots - mu), axis=-1, keepdims=True)
    normed = (dots - mu) * jax.lax.rsqrt(var + eps) * lnw_ref[...]
    m = jnp.max(normed, axis=-1, keepdims=True)
    e = jnp.exp(normed - m)
    s = jnp.sum(e, axis=-1, keepdims=True)
    # softmax(normed) > threshold  <=>  e > threshold * sum(e)  (no divide).
    hit = (e > threshold * s).astype(jnp.float32)                    # (tm, nc)

    qmask_ref[...] = jnp.max(hit, axis=-1).reshape(qmask_ref.shape)  # rows
    cmask_ref[...] = jnp.max(hit, axis=0).reshape(cmask_ref.shape)   # clusters


# --------------------- pass 2: masked tiled linear ------------------------- #
def _masked_matmul_kernel(rowact_ref, colact_ref,            # scalar prefetch
                          x_ref, wt_ref, b_ref, qm_ref, km_ref,
                          o_ref, acc_ref):
    """Tiled x @ W.T + b with precomputed row/column masks applied.

    rowact_ref : (nti,) int32 SMEM — any selected row in row-tile i
    colact_ref : (ntj,) int32 SMEM — any selected column in col-tile j
    x_ref      : (tm, tk) bf16,  wt_ref: (tk, tn) bf16,  b_ref: (1, tn) f32
    qm_ref     : (tm, 1) f32,    km_ref: (1, tn) f32
    o_ref      : (tm, tn) bf16 output,  acc_ref: (tm, tn) f32 VMEM accumulator
    """
    i, j, k = pl.program_id(0), pl.program_id(1), pl.program_id(2)

    @pl.when(k == 0)
    def _():
        acc_ref[...] = jnp.zeros_like(acc_ref)

    # Compute skip for tiles pass 1 proved fully masked (their x/W DMAs are
    # also elided via the data-dependent index_maps in the wrapper).
    active = jnp.logical_and(rowact_ref[i] > 0, colact_ref[j] > 0)

    @pl.when(active)
    def _():
        acc_ref[...] += jnp.dot(x_ref[...], wt_ref[...],
                                preferred_element_type=jnp.float32)

    @pl.when(k == pl.num_programs(2) - 1)
    def _():
        # Fused epilogue: NaN-safe select of (acc + bias) under the mask.
        mask = jnp.logical_and(qm_ref[...] > 0.0, km_ref[...] > 0.0)  # (tm,tn)
        o_ref[...] = jnp.where(mask, acc_ref[...] + b_ref[...],
                               0.0).astype(o_ref.dtype)


# ------------------------------- wrapper ------------------------------------ #
def hkrpq_linear(x, centroids_key, weight, bias, ln_weight, cluster_size, *,
                 threshold, eps=1e-5, tm=512, tn=512, tk=512, tm_ks=256,
                 out_dtype=jnp.bfloat16):
    """x: (..., in_features) -> (..., out_features)."""
    shape = x.shape
    in_f = shape[-1]
    out_f = weight.shape[0]
    nc = centroids_key.shape[0]

    x2d = x.reshape(-1, in_f)
    n = x2d.shape[0]

    vmem_cap = _vmem_capacity_bytes()
    vmem_budget = int(0.75 * vmem_cap)          # leave headroom vs 64/128 MiB

    # Tile sizes (capped to the problem size, kept HW- and VMEM-friendly).
    tm = min(tm, n)
    tn = min(tn, out_f)
    tk = min(tk, in_f)
    # Pass-1 x block is full-K; cap its rows so the double-buffered block stays
    # ~<= 8 MiB even at large in_features (v5e's 16 MiB default scoped VMEM).
    tm_ks_cap = max(16, ((8 * 1024 * 1024) // (2 * 2 * in_f)) // 16 * 16)
    tm_ks = min(tm_ks, n, tm_ks_cap)

    # bf16 packs 16 sublanes/vreg: row tiles must be multiples of 16.
    assert n % tm == 0 and tm % 16 == 0
    assert n % tm_ks == 0 and tm_ks % 16 == 0
    assert out_f % tn == 0 and tn % 128 == 0
    assert in_f % tk == 0 and tk % 128 == 0
    assert out_f % cluster_size == 0 and nc * cluster_size == out_f

    # bf16 streaming operands, f32 accumulation.
    x_bf16 = x2d.astype(jnp.bfloat16)
    ct_bf16 = centroids_key.T.astype(jnp.bfloat16)            # (in, nc)
    wt_bf16 = weight.T.astype(jnp.bfloat16)                   # (in, out)
    b2d = bias.reshape(1, -1).astype(jnp.float32)
    lnw = ln_weight.reshape(1, -1).astype(jnp.float32)

    # ---------------- pass 1: key search (tiny, fully parallel) ------------ #
    nti_ks = n // tm_ks
    fp1 = (2 * tm_ks * in_f * 2            # x block, double-buffered bf16
           + 2 * in_f * nc * 2             # centroid block
           + 4 * (tm_ks + nc) * 4          # tiny mask outputs (padded)
           + (1 << 20))                    # slack
    vmem_limit1 = min(max(fp1 + 4 * 1024 * 1024, 16 * 1024 * 1024), vmem_budget)

    qmask_tiles, cmask_tiles = pl.pallas_call(
        functools.partial(_keysearch_kernel, threshold=threshold, eps=eps),
        grid=(nti_ks,),
        out_shape=(jax.ShapeDtypeStruct((nti_ks, 1, tm_ks), jnp.float32),
                   jax.ShapeDtypeStruct((nti_ks, 1, nc), jnp.float32)),
        in_specs=[
            pl.BlockSpec((tm_ks, in_f), lambda i: (i, 0)),
            pl.BlockSpec((in_f, nc), lambda i: (0, 0)),
            pl.BlockSpec((1, nc), lambda i: (0, 0)),
        ],
        out_specs=(pl.BlockSpec((1, 1, tm_ks), lambda i: (i, 0, 0)),  # lane-dense
                   pl.BlockSpec((1, 1, nc), lambda i: (i, 0, 0))),    # partials
        compiler_params=pltpu.CompilerParams(
            dimension_semantics=("parallel",),   # no revisited output -> megacore
            vmem_limit_bytes=vmem_limit1),
    )(x_bf16, ct_bf16, lnw)

    # ---------------- tiny glue (plain JAX, all on device) ----------------- #
    q_bool = qmask_tiles.reshape(n) > 0.0                       # (n,)
    c_bool = cmask_tiles.reshape(nti_ks, nc).max(axis=0) > 0.0  # (nc,) OR-reduce
    # Clusters own contiguous blocks of `cluster_size` output columns.
    k_bool = jnp.repeat(c_bool, cluster_size)                   # (out_f,)

    nti, ntj, ntk = n // tm, out_f // tn, in_f // tk
    qmask2d = q_bool.astype(jnp.float32).reshape(n, 1)
    kmask2d = k_bool.astype(jnp.float32).reshape(1, out_f)
    row_act = q_bool.reshape(nti, tm).any(axis=1).astype(jnp.int32)   # (nti,)
    col_act = k_bool.reshape(ntj, tn).any(axis=1).astype(jnp.int32)   # (ntj,)

    # ---------------- pass 2: masked tiled linear --------------------------- #
    out_bytes = jnp.dtype(out_dtype).itemsize
    fp2 = (2 * (tm * tk + tk * tn) * 2      # x & W blocks, double-buffered bf16
           + 2 * tm * tn * out_bytes        # output blocks, double-buffered
           + tm * tn * 4                    # f32 accumulator scratch
           + 2 * (2 * tn * 4 + tm * 128 * 4)   # bias/kmask/qmask blocks (padded)
           + (2 << 20))                     # slack
    assert fp2 <= vmem_budget, (
        f"pass-2 tile footprint {fp2/2**20:.1f} MiB exceeds VMEM budget "
        f"{vmem_budget/2**20:.1f} MiB; reduce tm/tn/tk")
    vmem_limit2 = min(max(fp2 + 8 * 1024 * 1024, 32 * 1024 * 1024), vmem_budget)

    # DMA elision: freeze the K block index at 0 for inactive (i, j) tiles so
    # Pallas skips re-fetching x/W across the K loop for fully-masked tiles.
    def _x_map(i, j, k, ra, ca):
        return (i, jnp.where((ra[i] * ca[j]) > 0, k, 0))

    def _wt_map(i, j, k, ra, ca):
        return (jnp.where((ra[i] * ca[j]) > 0, k, 0), j)

    out = pl.pallas_call(
        _masked_matmul_kernel,
        out_shape=jax.ShapeDtypeStruct((n, out_f), out_dtype),
        grid_spec=pltpu.PrefetchScalarGridSpec(
            num_scalar_prefetch=2,                 # row_act, col_act -> SMEM
            grid=(nti, ntj, ntk),
            in_specs=[
                pl.BlockSpec((tm, tk), _x_map),
                pl.BlockSpec((tk, tn), _wt_map),
                pl.BlockSpec((1, tn), lambda i, j, k, ra, ca: (0, j)),
                pl.BlockSpec((tm, 1), lambda i, j, k, ra, ca: (i, 0)),
                pl.BlockSpec((1, tn), lambda i, j, k, ra, ca: (0, j)),
            ],
            out_specs=pl.BlockSpec((tm, tn), lambda i, j, k, ra, ca: (i, j)),
            scratch_shapes=[pltpu.VMEM((tm, tn), jnp.float32)],
        ),
        compiler_params=pltpu.CompilerParams(
            dimension_semantics=("parallel", "parallel", "arbitrary"),
            vmem_limit_bytes=vmem_limit2),
    )(row_act, col_act, x_bf16, wt_bf16, b2d, qmask2d, kmask2d)

    return out.reshape(*shape[:-1], out_f)


# ----------------------- deterministic parameter setup --------------------- #
def make_params(key, in_features, out_features, num_codebooks, n_clusters, sigma):
    sub_dim = in_features // num_codebooks
    cluster_size = out_features // n_clusters
    k_cb, k_cent, k_psel, k_prep, k_bias = jax.random.split(key, 5)

    # codebooks: (num_codebooks, 256, sub_dim) ~ N(0, 0.025)
    codebooks = 0.025 * jax.random.normal(k_cb, (num_codebooks, 256, sub_dim),
                                          dtype=jnp.float32)

    # centroid codes: (n_clusters, num_codebooks) in [0, 256)
    centroid_codes = jax.random.randint(k_cent, (n_clusters, num_codebooks), 0, 256)

    # per-output codes: repeat each centroid cluster_size times, then perturb
    codes = jnp.repeat(centroid_codes, cluster_size, axis=0)          # (out, ncb)
    n_pert = max(1, round(0.25 * num_codebooks))
    perturb_select = jax.random.randint(k_psel, (out_features, n_pert), 0, num_codebooks)
    perturb_replace = jax.random.randint(k_prep, (out_features, n_pert), 0, 256)
    codes = codes.at[jnp.arange(out_features)[:, None], perturb_select].set(perturb_replace)

    # expand codes -> dense W (out, in); centroids -> summary keys C (nc, in)
    def expand(code_mat):  # code_mat: (rows, num_codebooks)
        parts = [codebooks[c][code_mat[:, c]] for c in range(num_codebooks)]
        return jnp.concatenate(parts, axis=-1)

    weight = expand(codes)                    # (out_features, in_features)
    centroids_key = expand(centroid_codes)    # (n_clusters, in_features)

    # bias ~ U(-1/sqrt(fan_in), 1/sqrt(fan_in)), fan_in = in_features
    bound = 1.0 / math.sqrt(in_features)
    bias = jax.random.uniform(k_bias, (out_features,), minval=-bound, maxval=bound)

    ln_weight = jnp.ones((n_clusters,), jnp.float32) * sigma
    return weight, centroids_key, bias, ln_weight, cluster_size


# ------------------------------ pure-JAX reference ------------------------- #
def reference(x, centroids_key, weight, bias, ln_weight, cluster_size,
              threshold, eps=1e-5):
    shape = x.shape
    # Mirror the kernel's bf16 streaming precision (f32 accumulation).
    x2d = x.reshape(-1, shape[-1]).astype(jnp.bfloat16).astype(jnp.float32)
    cb = centroids_key.astype(jnp.bfloat16).astype(jnp.float32)
    wb = weight.astype(jnp.bfloat16).astype(jnp.float32)

    dots = jnp.dot(x2d, cb.T, precision=jax.lax.Precision.HIGHEST)
    mu = dots.mean(-1, keepdims=True)
    var = ((dots - mu) ** 2).mean(-1, keepdims=True)
    normed = (dots - mu) * jax.lax.rsqrt(var + eps) * ln_weight
    p = jax.nn.softmax(normed, axis=-1)
    hit = p > threshold
    qmask = jnp.any(hit, axis=-1)
    kmask = jnp.repeat(jnp.any(hit, axis=0), cluster_size)

    y = jnp.dot(x2d, wb.T, precision=jax.lax.Precision.HIGHEST) + bias
    out = jnp.where(qmask[:, None] & kmask[None, :], y, 0.0)
    return out.reshape(*shape[:-1], -1)


# ----------------------------------- main ---------------------------------- #
if __name__ == "__main__":
    in_features, out_features = 256, 256
    num_codebooks = 4
    n_clusters = num_codebooks          # default n_clusters = num_codebooks
    threshold, sigma = 0.9, 10.0
    batch, seq = 2, 16                  # n = 32 flattened query rows

    root = jax.random.PRNGKey(0)
    k_param, k_x = jax.random.split(root)
    (weight, centroids_key, bias, ln_weight, cluster_size) = make_params(
        k_param, in_features, out_features, num_codebooks, n_clusters, sigma)

    x = jax.random.normal(k_x, (batch, seq, in_features), dtype=jnp.float32)

    # Small tiles so the demo exercises a real (2, 2, 2) grid with pipelining,
    # K accumulation, DMA elision for masked tiles, and parallel pass-1 tiles.
    out = hkrpq_linear(x, centroids_key, weight, bias, ln_weight, cluster_size,
                       threshold=threshold, tm=16, tn=128, tk=128, tm_ks=16)
    out = jax.block_until_ready(out)

    ref = reference(x, centroids_key, weight, bias, ln_weight, cluster_size,
                    threshold)
    # Output is bf16 (halved writeback); compare against the f32 reference with
    # a bf16-rounding tolerance.
    np.testing.assert_allclose(np.asarray(out, dtype=np.float32),
                               np.asarray(ref), rtol=3e-2, atol=3e-2)

    assert out.shape == (batch, seq, out_features)
    assert out.dtype == jnp.bfloat16
    print("KERNEL_OK")
</pallas_src>

<mosaic_0001>
module attributes {stable_mosaic.version = 11 : i64} {
  func.func @_keysearch_kernel(%arg0: i32, %arg1: memref<16x256xbf16, #tpu.memory_space<vmem>>, %arg2: memref<256x4xbf16, #tpu.memory_space<vmem>>, %arg3: memref<1x4xf32, #tpu.memory_space<vmem>>, %arg4: memref<1x1x16xf32, #tpu.memory_space<vmem>>, %arg5: memref<1x1x4xf32, #tpu.memory_space<vmem>>) attributes {dimension_semantics = [#tpu.dimension_semantics<parallel>], iteration_bounds = array<i64: 2>, scalar_prefetch = 0 : i64, scratch_operands = 0 : i64, tpu.core_type = #tpu.core_type<tc>, window_params = [{transform_indices = @transform_0, window_bounds = array<i64: 16, 256>}, {pipeline_mode = #tpu.pipeline_mode<synchronous>, transform_indices = @transform_1, window_bounds = array<i64: 256, 4>}, {pipeline_mode = #tpu.pipeline_mode<synchronous>, transform_indices = @transform_2, window_bounds = array<i64: 1, 4>}, {transform_indices = @transform_3, window_bounds = array<i64: 1, 1, 16>}, {transform_indices = @transform_4, window_bounds = array<i64: 1, 1, 4>}]} {
    %c0 = arith.constant 0 : index
    %c0_0 = arith.constant 0 : index
    %0 = vector.load %arg1[%c0, %c0_0] : memref<16x256xbf16, #tpu.memory_space<vmem>>, vector<16x256xbf16>
    %c0_1 = arith.constant 0 : index
    %c0_2 = arith.constant 0 : index
    %1 = vector.load %arg2[%c0_1, %c0_2] : memref<256x4xbf16, #tpu.memory_space<vmem>>, vector<256x4xbf16>
    %cst = arith.constant dense<0.000000e+00> : vector<16x4xf32>
    %2 = tpu.matmul %0, %1, %cst {dimension_numbers = #tpu.dot_dimension_numbers<[1], [0], [0], [1], [0, 0, 1, 1], [], []>} : vector<16x256xbf16>, vector<256x4xbf16>, vector<16x4xf32> -> vector<16x4xf32>
    %cst_3 = arith.constant dense<0.000000e+00> : vector<16xf32>
    %3 = vector.multi_reduction <add>, %2, %cst_3 [1] : vector<16x4xf32> to vector<16xf32>
    %4 = vector.shape_cast %3 : vector<16xf32> to vector<16x1xf32>
    %cst_4 = arith.constant 4.000000e+00 : f32
    %5 = vector.broadcast %cst_4 : f32 to vector<16x1xf32>
    %6 = arith.divf %4, %5 : vector<16x1xf32>
    %7 = vector.broadcast %6 : vector<16x1xf32> to vector<16x4xf32>
    %8 = arith.subf %2, %7 : vector<16x4xf32>
    %9 = arith.mulf %8, %8 : vector<16x4xf32>
    %cst_5 = arith.constant dense<0.000000e+00> : vector<16xf32>
    %10 = vector.multi_reduction <add>, %9, %cst_5 [1] : vector<16x4xf32> to vector<16xf32>
    %11 = vector.shape_cast %10 : vector<16xf32> to vector<16x1xf32>
    %cst_6 = arith.constant 4.000000e+00 : f32
    %12 = vector.broadcast %cst_6 : f32 to vector<16x1xf32>
    %13 = arith.divf %11, %12 : vector<16x1xf32>
    %14 = vector.broadcast %6 : vector<16x1xf32> to vector<16x4xf32>
    %15 = arith.subf %2, %14 : vector<16x4xf32>
    %cst_7 = arith.constant 9.99999974E-6 : f32
    %16 = vector.broadcast %cst_7 : f32 to vector<16x1xf32>
    %17 = arith.addf %13, %16 : vector<16x1xf32>
    %18 = math.rsqrt %17 : vector<16x1xf32>
    %19 = vector.broadcast %18 : vector<16x1xf32> to vector<16x4xf32>
    %20 = arith.mulf %15, %19 : vector<16x4xf32>
    %c0_8 = arith.constant 0 : index
    %c0_9 = arith.constant 0 : index
    %21 = vector.load %arg3[%c0_8, %c0_9] : memref<1x4xf32, #tpu.memory_space<vmem>>, vector<1x4xf32>
    %22 = vector.broadcast %21 : vector<1x4xf32> to vector<16x4xf32>
    %23 = arith.mulf %20, %22 : vector<16x4xf32>
    %cst_10 = arith.constant dense<0xFF800000> : vector<16xf32>
    %24 = vector.multi_reduction <maximumf>, %23, %cst_10 [1] : vector<16x4xf32> to vector<16xf32>
    %25 = vector.shape_cast %24 : vector<16xf32> to vector<16x1xf32>
    %26 = vector.broadcast %25 : vector<16x1xf32> to vector<16x4xf32>
    %27 = arith.subf %23, %26 : vector<16x4xf32>
    %28 = math.exp %27 : vector<16x4xf32>
    %cst_11 = arith.constant dense<0.000000e+00> : vector<16xf32>
    %29 = vector.multi_reduction <add>, %28, %cst_11 [1] : vector<16x4xf32> to vector<16xf32>
    %30 = vector.shape_cast %29 : vector<16xf32> to vector<16x1xf32>
    %cst_12 = arith.constant 0.899999976 : f32
    %31 = vector.broadcast %cst_12 : f32 to vector<16x1xf32>
    %32 = arith.mulf %31, %30 : vector<16x1xf32>
    %33 = vector.broadcast %32 : vector<16x1xf32> to vector<16x4xf32>
    %34 = arith.cmpf ogt, %28, %33 : vector<16x4xf32>
    %35 = arith.extui %34 : vector<16x4xi1> to vector<16x4xi32>
    %36 = arith.sitofp %35 : vector<16x4xi32> to vector<16x4xf32>
    %cst_13 = arith.constant dense<0xFF800000> : vector<16xf32>
    %37 = vector.multi_reduction <maximumf>, %36, %cst_13 [1] : vector<16x4xf32> to vector<16xf32>
    %38 = vector.shape_cast %37 : vector<16xf32> to vector<1x1x16xf32>
    %c0_14 = arith.constant 0 : index
    %c0_15 = arith.constant 0 : index
    %c0_16 = arith.constant 0 : index
    %39 = vector.load %arg4[%c0_14, %c0_15, %c0_16] : memref<1x1x16xf32, #tpu.memory_space<vmem>>, vector<1x1x16xf32>
    tpu.vector_store %arg4[%c0_14, %c0_15, %c0_16], %38 {strides = array<i32>} : memref<1x1x16xf32, #tpu.memory_space<vmem>>, vector<1x1x16xf32>,
    %cst_17 = arith.constant dense<0xFF800000> : vector<4xf32>
    %40 = vector.multi_reduction <maximumf>, %36, %cst_17 [0] : vector<16x4xf32> to vector<4xf32>
    %41 = vector.shape_cast %40 : vector<4xf32> to vector<1x1x4xf32>
    %c0_18 = arith.constant 0 : index
    %c0_19 = arith.constant 0 : index
    %c0_20 = arith.constant 0 : index
    %42 = vector.load %arg5[%c0_18, %c0_19, %c0_20] : memref<1x1x4xf32, #tpu.memory_space<vmem>>, vector<1x1x4xf32>
    tpu.vector_store %arg5[%c0_18, %c0_19, %c0_20], %41 {strides = array<i32>} : memref<1x1x4xf32, #tpu.memory_space<vmem>>, vector<1x1x4xf32>,
    return
  }
  func.func @transform_0(%arg0: i32) -> (i32, i32) {
    %c0_i32 = arith.constant 0 : i32
    %c0_i32_0 = arith.constant 0 : i32
    return %arg0, %c0_i32 : i32, i32
  }
  func.func @transform_1(%arg0: i32) -> (i32, i32) {
    %c0_i32 = arith.constant 0 : i32
    %c0_i32_0 = arith.constant 0 : i32
    %c0_i32_1 = arith.constant 0 : i32
    return %c0_i32, %c0_i32_0 : i32, i32
  }
  func.func @transform_2(%arg0: i32) -> (i32, i32) {
    %c0_i32 = arith.constant 0 : i32
    %c0_i32_0 = arith.constant 0 : i32
    %c0_i32_1 = arith.constant 0 : i32
    return %c0_i32, %c0_i32_0 : i32, i32
  }
  func.func @transform_3(%arg0: i32) -> (i32, i32, i32) {
    %c0_i32 = arith.constant 0 : i32
    %c0_i32_0 = arith.constant 0 : i32
    %c0_i32_1 = arith.constant 0 : i32
    return %arg0, %c0_i32, %c0_i32_0 : i32, i32, i32
  }
  func.func @transform_4(%arg0: i32) -> (i32, i32, i32) {
    %c0_i32 = arith.constant 0 : i32
    %c0_i32_0 = arith.constant 0 : i32
    %c0_i32_1 = arith.constant 0 : i32
    return %arg0, %c0_i32, %c0_i32_0 : i32, i32, i32
  }
}

</mosaic_0001>

<llo_original>
// kernel: tpu_custom_call.1
$region0: #{tpu_custom_call.1}
  #allocation0 [shape = 'u32[]', space=smem, size = 0x4, offset = 0x4, fixed_abs, tag = 'smem constant byte address 0x4 - core index']
  #allocation1 [shape = 'u32[144,128]{1,0:T(1,128)}', space=vmem, size = 0x12000, scoped, tag = 'internal scratch']
  %s0 = inlined_call_operand.vmem [shape: bf16[32,256], index: 0, kind: input, shape index: {}]
  %s1 = inlined_call_operand.vmem [shape: bf16[256,4], index: 1, kind: input, shape index: {}]
  %s2 = inlined_call_operand.vmem [shape: f32[1,4], index: 2, kind: input, shape index: {}]
  %s3 = inlined_call_operand.hbm [shape: f32[2,1,16], index: 3, kind: output, shape index: {0}]
  %s4 = inlined_call_operand.hbm [shape: f32[2,1,4], index: 4, kind: output, shape index: {1}]
  %5 = xla_tuple %s3, %s4
  %s6 = sld [smem:[#allocation0]]
  $region53: #{tpu_custom_call.1} parent=0
    _
  %s8 = ssub.s32 1, %s6
  %s9 = scalar_select 0, %s8, %s6
  $region1: #{tpu_custom_call.1} parent=0
    #allocation2 [shape = 'u8[1024]{0}', space=vmem, size = 0x400, scoped, tag = 'output window, operand 0']
    #allocation3 [shape = 's32[2]{0}', space=sflag, size = 0x8, scoped, tag = 'scoped memory for tpu_custom_call.1']
    #allocation4 [shape = 'u8[1024]{0}', space=vmem, size = 0x400, scoped, tag = 'output window, operand 1']
    #allocation5 [shape = 's32[2]{0}', space=sflag, size = 0x8, scoped, tag = 'scoped memory for tpu_custom_call.1']
    %10 = vsyncpa [#allocation3], 0
    %s11 = scalar_lea.sflag [#allocation3], 1
    %12 = vsyncpa %s11, 0
    %13 = vsyncpa [#allocation5], 0
    %s14 = scalar_lea.sflag [#allocation5], 1
    %15 = vsyncpa %s14, 0
    loop: start=0, step=1, limit=4
    $region2: #{tpu_custom_call.1} parent=1 // loop_pre_header
      _
    $region3: #{tpu_custom_call.1} parent=1 // loop_header
      %s17 = sphi 0, %s21
      %p18 = scmp.ge.s32.totalorder %s17, 4
      %s27 = sphi 0, %s29
      %s30 = sphi 0, %s27
      %s31 = sphi 0, %s30
      %s47 = sphi 0, %s31
      %s51 = sphi 0, %s51
      %s53 = sphi 0, %s51
      %s54 = sphi 0, %s53
      %s68 = sphi 0, %s54
      %s72 = sphi 0, %s72
      %s74 = sphi 0, %s72
      %s75 = sphi 0, %s74
      %s89 = sphi 0, %s75
      %s95 = sphi 0, %s97
      %s98 = sphi 0, %s95
      %s99 = sphi 0, %s98
      %s115 = sphi 0, %s99
      %s121 = sphi 0, %s123
      %s124 = sphi 0, %s121
      %s125 = sphi 0, %s124
      %s141 = sphi 0, %s125
    $region4: #{tpu_custom_call.1} parent=1 // loop_header_branch
      %20 = sbr.rel (%p18) target = $region8
    $region5: #{tpu_custom_call.1} parent=1 // loop_body
      %s22 = ssub.s32 %s17, 1
      %s23 = ssub.s32 %s17, 2
      %s24 = sadd.s32 %s17, 1
      %s25 = ssub.s32 %s17, %s24
      %p26 = scmp.eq.s32.totalorder %s25, 0
      %s28 = sadd.s32 %s27, 1
      %s29 = scalar_select %p26, %s27, %s28
      %p32 = pneg %p26
      %p33 = scmp.eq.s32.totalorder %s17, 1
      %p34 = por %p32, %p33
      %p35 = scmp.ne.s32.totalorder %s27, %s30
      %p36 = scmp.eq.s32.totalorder %s17, 0
      %p37 = por %p35, %p36
      %p38 = scmp.ne.s32.totalorder %s27, %s30
      %p39 = scmp.eq.s32.totalorder %s22, 1
      %p40 = por %p38, %p39
      %p41 = scmp.ne.s32.totalorder %s30, %s31
      %p42 = scmp.eq.s32.totalorder %s22, 0
      %p43 = por %p41, %p42
      %p44 = scmp.ne.s32.totalorder %s30, %s31
      %p45 = scmp.eq.s32.totalorder %s23, 1
      %p46 = por %p44, %p45
      %p48 = scmp.ne.s32.totalorder %s31, %s47
      %p49 = scmp.eq.s32.totalorder %s23, 0
      %p50 = por %p48, %p49
      %s52 = sadd.s32 %s51, 1
      %p55 = scmp.eq.s32.totalorder %s17, 1
      %p56 = scmp.ne.s32.totalorder %s51, %s53
      %p57 = scmp.eq.s32.totalorder %s17, 0
      %p58 = por %p56, %p57
      %p59 = scmp.ne.s32.totalorder %s51, %s53
      %p60 = scmp.eq.s32.totalorder %s22, 1
      %p61 = por %p59, %p60
      %p62 = scmp.ne.s32.totalorder %s53, %s54
      %p63 = scmp.eq.s32.totalorder %s22, 0
      %p64 = por %p62, %p63
      %p65 = scmp.ne.s32.totalorder %s53, %s54
      %p66 = scmp.eq.s32.totalorder %s23, 1
      %p67 = por %p65, %p66
      %p69 = scmp.ne.s32.totalorder %s54, %s68
      %p70 = scmp.eq.s32.totalorder %s23, 0
      %p71 = por %p69, %p70
      %s73 = sadd.s32 %s72, 1
      %p76 = scmp.eq.s32.totalorder %s17, 1
      %p77 = scmp.ne.s32.totalorder %s72, %s74
      %p78 = scmp.eq.s32.totalorder %s17, 0
      %p79 = por %p77, %p78
      %p80 = scmp.ne.s32.totalorder %s72, %s74
      %p81 = scmp.eq.s32.totalorder %s22, 1
      %p82 = por %p80, %p81
      %p83 = scmp.ne.s32.totalorder %s74, %s75
      %p84 = scmp.eq.s32.totalorder %s22, 0
      %p85 = por %p83, %p84
      %p86 = scmp.ne.s32.totalorder %s74, %s75
      %p87 = scmp.eq.s32.totalorder %s23, 1
      %p88 = por %p86, %p87
      %p90 = scmp.ne.s32.totalorder %s75, %s89
      %p91 = scmp.eq.s32.totalorder %s23, 0
      %p92 = por %p90, %p91
      %s93 = ssub.s32 %s17, %s24
      %p94 = scmp.eq.s32.totalorder %s93, 0
      %s96 = sadd.s32 %s95, 1
      %s97 = scalar_select %p94, %s95, %s96
      %p100 = pneg %p94
      %p101 = scmp.eq.s32.totalorder %s17, 1
      %p102 = por %p100, %p101
      %p103 = scmp.ne.s32.totalorder %s95, %s98
      %p104 = scmp.eq.s32.totalorder %s17, 0
      %p105 = por %p103, %p104
      %p106 = scmp.ne.s32.totalorder %s95, %s98
      %p107 = scmp.eq.s32.totalorder %s22, 1
      %p108 = por %p106, %p107
      %p109 = scmp.ne.s32.totalorder %s98, %s99
      %p110 = scmp.eq.s32.totalorder %s22, 0
      %p111 = por %p109, %p110
      %p112 = scmp.ne.s32.totalorder %s98, %s99
      %p113 = scmp.eq.s32.totalorder %s23, 1
      %p114 = por %p112, %p113
      %p116 = scmp.ne.s32.totalorder %s99, %s115
      %p117 = scmp.eq.s32.totalorder %s23, 0
      %p118 = por %p116, %p117
      %s119 = ssub.s32 %s17, %s24
      %p120 = scmp.eq.s32.totalorder %s119, 0
      %s122 = sadd.s32 %s121, 1
      %s123 = scalar_select %p120, %s121, %s122
      %p126 = pneg %p120
      %p127 = scmp.eq.s32.totalorder %s17, 1
      %p128 = por %p126, %p127
      %p129 = scmp.ne.s32.totalorder %s121, %s124
      %p130 = scmp.eq.s32.totalorder %s17, 0
      %p131 = por %p129, %p130
      %p132 = scmp.ne.s32.totalorder %s121, %s124
      %p133 = scmp.eq.s32.totalorder %s22, 1
      %p134 = por %p132, %p133
      %p135 = scmp.ne.s32.totalorder %s124, %s125
      %p136 = scmp.eq.s32.totalorder %s22, 0
      %p137 = por %p135, %p136
      %p138 = scmp.ne.s32.totalorder %s124, %s125
      %p139 = scmp.eq.s32.totalorder %s23, 1
      %p140 = por %p138, %p139
      %p142 = scmp.ne.s32.totalorder %s125, %s141
      %p143 = scmp.eq.s32.totalorder %s23, 0
      %p144 = por %p142, %p143
      %p145 = scmp.le.s32.totalorder 1, %s17
      %p146 = scmp.lt.s32.totalorder %s17, 3
      %p147 = pnand %p145, %p146
      %p148 = pneg %p147
      // Predicated region
      $region9: #{tpu_custom_call.1} parent=5 // pred_check
        _
      $region10: #{tpu_custom_call.1} parent=5 // pred_check_branch
        %150 = sbr.rel (%p147) target = $region12
      $region11: #{tpu_custom_call.1} parent=5 // pred_region
        %s151 = ssub.s32 %s17, 1
        // Predicated region
        $region13: #{tpu_custom_call.1} parent=11 // pred_check
          %p152 = pneg %p64
        $region14: #{tpu_custom_call.1} parent=11 // pred_check_branch
          %154 = sbr.rel (%p152) target = $region16
        $region15: #{tpu_custom_call.1} parent=11 // pred_region
          _
        $region16: #{tpu_custom_call.1} parent=11 // pred_fallthru
          _
        // Predicated region
        $region17: #{tpu_custom_call.1} parent=11 // pred_check
          %p155 = pneg %p85
        $region18: #{tpu_custom_call.1} parent=11 // pred_check_branch
          %157 = sbr.rel (%p155) target = $region20
        $region19: #{tpu_custom_call.1} parent=11 // pred_region
          _
        $region20: #{tpu_custom_call.1} parent=11 // pred_fallthru
          _
      $region12: #{tpu_custom_call.1} parent=5 // pred_fallthru
        _
      %p158 = scmp.lt.s32.totalorder %s17, 2
      // Predicated region
      $region21: #{tpu_custom_call.1} parent=5 // pred_check
        %p159 = pneg %p158
      $region22: #{tpu_custom_call.1} parent=5 // pred_check_branch
        %161 = sbr.rel (%p159) target = $region24
      $region23: #{tpu_custom_call.1} parent=5 // pred_region
        // Predicated region
        $region25: #{tpu_custom_call.1} parent=23 // pred_check
          %p162 = pneg %p37
        $region26: #{tpu_custom_call.1} parent=23 // pred_check_branch
          %164 = sbr.rel (%p162) target = $region28
        $region27: #{tpu_custom_call.1} parent=23 // pred_region
          %s165 = smul.u32 2, %s17
          %p166 = scmp.lt.s32.totalorder %s165, 3
          %s167 = scalar_select %p166, %s165, 3
          %s168 = smul.addr %s167, 2
          %s169 = smul.addr %s168, 4
          %s170 = scalar_lea.vmem %s0, %s169
          %s171 = smul.u32 2, %s17
        $region28: #{tpu_custom_call.1} parent=23 // pred_fallthru
          _
      $region24: #{tpu_custom_call.1} parent=5 // pred_fallthru
        _
      %p172 = scmp.le.s32.totalorder 1, %s17
      %p173 = scmp.lt.s32.totalorder %s17, 3
      %p174 = pnand %p172, %p173
      %p175 = pneg %p174
      // Predicated region
      $region29: #{tpu_custom_call.1} parent=5 // pred_check
        _
      $region30: #{tpu_custom_call.1} parent=5 // pred_check_branch
        %177 = sbr.rel (%p174) target = $region32
      $region31: #{tpu_custom_call.1} parent=5 // pred_region
        %s178 = ssub.s32 %s17, 1
        %s179 = smul.u32 2, %s22
        %p180 = scmp.lt.s32.totalorder %s179, 3
        %s181 = scalar_select %p180, %s179, 3
        %s182 = smul.addr %s181, 2
        %s183 = smul.addr %s182, 4
        %s184 = scalar_lea.vmem %s0, %s183
        %p185 = pneg %p43
        %p186 = pneg %p40
        %p187 = pneg %p64
        %p188 = pneg %p61
        %p189 = pneg %p85
        %p190 = pneg %p82
        %p191 = pneg %p111
        %p192 = pneg %p108
        %s193 = sand.u32 %s98, 1
        %s194 = scalar_lea.sflag [#allocation3], %s193
        %s195 = sand.u32 %s98, 1
        %s196 = scalar_lea.vmem [#allocation2], %s195
        %p197 = pneg %p137
        %p198 = pneg %p134
        %s199 = sand.u32 %s124, 1
        %s200 = scalar_lea.sflag [#allocation5], %s199
        %s201 = sand.u32 %s124, 1
        %s202 = scalar_lea.vmem [#allocation4], %s201
        %s203 = smul.u32 2, %s22
        %p204 = scmp.lt.s32.totalorder %s203, 3
        %s205 = scalar_select %p204, %s203, 3
        %s206 = smul.addr %s205, 2
        %s207 = smul.addr %s206, 4
        %s208 = scalar_lea.vmem %s0, %s207
        %s209 = smul.u32 2, %s22
        %v211 = vld [vmem:[%s208] sm:$0xff]
        %v212 = vld [vmem:[%s208 + $0x8] sm:$0xff]
        %v213 = vld [vmem:[%s1] sm:$0xf]
        %v214 = vld [vmem:[%s1 + $0x4] sm:$0xf]
        %v215 = vld [vmem:[%s1 + $0x8] sm:$0xf]
        %v216 = vld [vmem:[%s1 + $0xc] sm:$0xf]
        %v217 = vld [vmem:[%s1 + $0x10] sm:$0xf]
        %v218 = vld [vmem:[%s1 + $0x14] sm:$0xf]
        %v219 = vld [vmem:[%s1 + $0x18] sm:$0xf]
        %v220 = vld [vmem:[%s1 + $0x1c] sm:$0xf]
        %v221 = vld [vmem:[%s1 + $0x20] sm:$0xf]
        %v222 = vld [vmem:[%s1 + $0x24] sm:$0xf]
        %v223 = vld [vmem:[%s1 + $0x28] sm:$0xf]
        %v224 = vld [vmem:[%s1 + $0x2c] sm:$0xf]
        %v225 = vld [vmem:[%s1 + $0x30] sm:$0xf]
        %v226 = vld [vmem:[%s1 + $0x34] sm:$0xf]
        %v227 = vld [vmem:[%s1 + $0x38] sm:$0xf]
        %v228 = vld [vmem:[%s1 + $0x3c] sm:$0xf]
        %v229 = vld [vmem:[%s1 + $0x40] sm:$0xf]
        %v230 = vld [vmem:[%s1 + $0x44] sm:$0xf]
        %v231 = vld [vmem:[%s1 + $0x48] sm:$0xf]
        %v232 = vld [vmem:[%s1 + $0x4c] sm:$0xf]
        %v233 = vld [vmem:[%s1 + $0x50] sm:$0xf]
        %v234 = vld [vmem:[%s1 + $0x54] sm:$0xf]
        %v235 = vld [vmem:[%s1 + $0x58] sm:$0xf]
        %v236 = vld [vmem:[%s1 + $0x5c] sm:$0xf]
        %v237 = vld [vmem:[%s1 + $0x60] sm:$0xf]
        %v238 = vld [vmem:[%s1 + $0x64] sm:$0xf]
        %v239 = vld [vmem:[%s1 + $0x68] sm:$0xf]
        %v240 = vld [vmem:[%s1 + $0x6c] sm:$0xf]
        %v241 = vld [vmem:[%s1 + $0x70] sm:$0xf]
        %v242 = vld [vmem:[%s1 + $0x74] sm:$0xf]
        %v243 = vld [vmem:[%s1 + $0x78] sm:$0xf]
        %v244 = vld [vmem:[%s1 + $0x7c] sm:$0xf]
        %v247 = vunpack.c.l.b16 %v211
        %v248 = vunpack.c.h.b16 %v211
        %v249 = vunpack.c.l.b16 %v212
        %v250 = vunpack.c.h.b16 %v212
        %v251 = vpack.c.b16 %v249, %v247
        %v252 = vpack.c.b16 %v250, %v248
        %v287 = vunpack.c.l.b16 %v213
        %v288 = vunpack.c.l.b16 %v214
        %v289 = vunpack.c.l.b16 %v215
        %v290 = vunpack.c.l.b16 %v216
        %v291 = vunpack.c.l.b16 %v217
        %v292 = vunpack.c.l.b16 %v218
        %v293 = vunpack.c.l.b16 %v219
        %v294 = vunpack.c.l.b16 %v220
        %v295 = vunpack.c.l.b16 %v221
        %v296 = vunpack.c.l.b16 %v222
        %v297 = vunpack.c.l.b16 %v223
        %v298 = vunpack.c.l.b16 %v224
        %v299 = vunpack.c.l.b16 %v225
        %v300 = vunpack.c.l.b16 %v226
        %v301 = vunpack.c.l.b16 %v227
        %v302 = vunpack.c.l.b16 %v228
        %v303 = vunpack.c.l.b16 %v229
        %v304 = vunpack.c.l.b16 %v230
        %v305 = vunpack.c.l.b16 %v231
        %v306 = vunpack.c.l.b16 %v232
        %v307 = vunpack.c.l.b16 %v233
        %v308 = vunpack.c.l.b16 %v234
        %v309 = vunpack.c.l.b16 %v235
        %v310 = vunpack.c.l.b16 %v236
        %v311 = vunpack.c.l.b16 %v237
        %v312 = vunpack.c.l.b16 %v238
        %v313 = vunpack.c.l.b16 %v239
        %v314 = vunpack.c.l.b16 %v240
        %v315 = vunpack.c.l.b16 %v241
        %v316 = vunpack.c.l.b16 %v242
        %v317 = vunpack.c.l.b16 %v243
        %v318 = vunpack.c.l.b16 %v244
        %v319 = vpack.c.b16 %v288, %v287
        %v320 = vpack.c.b16 %v290, %v289
        %v321 = vpack.c.b16 %v292, %v291
        %v322 = vpack.c.b16 %v294, %v293
        %v323 = vpack.c.b16 %v296, %v295
        %v324 = vpack.c.b16 %v298, %v297
        %v325 = vpack.c.b16 %v300, %v299
        %v326 = vpack.c.b16 %v302, %v301
        %v327 = vpack.c.b16 %v304, %v303
        %v328 = vpack.c.b16 %v306, %v305
        %v329 = vpack.c.b16 %v308, %v307
        %v330 = vpack.c.b16 %v310, %v309
        %v331 = vpack.c.b16 %v312, %v311
        %v332 = vpack.c.b16 %v314, %v313
        %v333 = vpack.c.b16 %v316, %v315
        %v334 = vpack.c.b16 %v318, %v317
        %351 = vmatprep.subr.bf16.mxu0 0
        %352 = vmatpush1.bf16.msra.mxu0 %v326
        %353 = vmatprep.subr.bf16.mxu0 0
        %354 = vmatpush1.bf16.msra.mxu0 %v325
        %355 = vmatprep.subr.bf16.mxu0 0
        %356 = vmatpush1.bf16.msra.mxu0 %v324
        %357 = vmatprep.subr.bf16.mxu0 0
        %358 = vmatpush1.bf16.msra.mxu0 %v323
        %359 = vmatprep.subr.bf16.mxu0 0
        %360 = vmatpush1.bf16.msra.mxu0 %v322
        %361 = vmatprep.subr.bf16.mxu0 0
        %362 = vmatpush1.bf16.msra.mxu0 %v321
        %363 = vmatprep.subr.bf16.mxu0 0
        %364 = vmatpush1.bf16.msra.mxu0 %v320
        %365 = vmatprep.subr.bf16.mxu0 0
        %366 = vmatpush1.bf16.msra.mxu0 %v319
        %367 = vmatprep.subr.bf16.mxu0 0
        %368 = vmatpush2.bf16.msra.mxu0 %v334
        %369 = vmatprep.subr.bf16.mxu0 0
        %370 = vmatpush2.bf16.msra.mxu0 %v333
        %371 = vmatprep.subr.bf16.mxu0 0
        %372 = vmatpush2.bf16.msra.mxu0 %v332
        %373 = vmatprep.subr.bf16.mxu0 0
        %374 = vmatpush2.bf16.msra.mxu0 %v331
        %375 = vmatprep.subr.bf16.mxu0 0
        %376 = vmatpush2.bf16.msra.mxu0 %v330
        %377 = vmatprep.subr.bf16.mxu0 0
        %378 = vmatpush2.bf16.msra.mxu0 %v329
        %379 = vmatprep.subr.bf16.mxu0 0
        %380 = vmatpush2.bf16.msra.mxu0 %v328
        %381 = vmatprep.subr.bf16.mxu0 0
        %382 = vmatpush2.bf16.msra.mxu0 %v327
        %383 = vmatprep.mubr.bf16.mxu0 %v252
        %384 = vmatmul.mubr.bf16.gmra.mxu0 %v251
        %v385 = vpop.f32.mrf.mxu0
        %v386 = vadd.f32 0.0, %v385
        %v387 = vpop.f32.mrf.mxu0
        %v388 = vpop.f32.mrf.mxu0
        %v389 = vadd.f32 0.0, %v388
        %v390 = vpop.f32.mrf.mxu0
        %391 = vdwg.mxu0
        %vm392 = vcmask 31744
        %v393 = vsel %vm392, %v386, 0.0
        %394 = vadd.xlane.f32.xlu0 %v393
        %v395 = vpop.xlane.xlu0 %394
        %v396 = vsel %vm392, %v389, 0.0
        %397 = vadd.xlane.f32.xlu0 %v396
        %v398 = vpop.xlane.xlu0 %397
        %v399 = vrcp.pop 4.0
        %v400 = vmul.f32 %v395, %v399
        %v401 = vmul.f32 %v398, %v399
        %v402 = vsub.f32 %v386, %v400
        %v403 = vsub.f32 %v389, %v401
        %v404 = vmul.f32 %v402, %v402
        %v405 = vmul.f32 %v403, %v403
        %v406 = vsel %vm392, %v404, 0.0
        %407 = vadd.xlane.f32.xlu0 %v406
        %v408 = vpop.xlane.xlu0 %407
        %v409 = vsel %vm392, %v405, 0.0
        %410 = vadd.xlane.f32.xlu0 %v409
        %v411 = vpop.xlane.xlu0 %410
        %v412 = vmul.f32 %v408, %v399
        %v413 = vmul.f32 %v411, %v399
        %v414 = vadd.f32 %v412, 1e-05
        %v415 = vadd.f32 %v413, 1e-05
        %v416 = vrsqrt.pop %v414
        %v417 = vrsqrt.pop %v415
        %v418 = vmul.f32 %v402, %v416
        %v419 = vmul.f32 %v403, %v417
        %v420 = vld [vmem:[%s2] sm:$0x1]
        %v422 = vlaneseq
        %v423 = vshrl.u32 %v422, 7
        %v424 = vsub.s32 0, %v423
        %v425 = vrot.slane %v420, %v424
        %v427 = vmul.f32 %v418, %v425
        %v428 = vmul.f32 %v419, %v425
        %v429 = vsel %vm392, %v427, -inf
        %430 = vmax.xlane.f32.xlu0 %v429
        %v431 = vpop.xlane.xlu0 %430
        %v432 = vsel %vm392, %v428, -inf
        %433 = vmax.xlane.f32.xlu0 %v432
        %v434 = vpop.xlane.xlu0 %433
        %v435 = vsub.f32 %v427, %v431
        %v436 = vsub.f32 %v428, %v434
        %v437 = vmul.f32 %v435, 1.442695
        %v438 = vpow.pop %v437
        %v439 = vmul.f32 %v436, 1.442695
        %v440 = vpow.pop %v439
        %v441 = vsel %vm392, %v438, 0.0
        %442 = vadd.xlane.f32.xlu0 %v441
        %v443 = vpop.xlane.xlu0 %442
        %v444 = vsel %vm392, %v440, 0.0
        %445 = vadd.xlane.f32.xlu0 %v444
        %v446 = vpop.xlane.xlu0 %445
        %v447 = vmul.f32 %v443, 0.9
        %v448 = vmul.f32 %v446, 0.9
        %vm449 = vcmp.gt.f32.partialorder %v438, %v447
        %vm450 = vcmp.gt.f32.partialorder %v440, %v448
        %v451 = vsel %vm449, 1, 0
        %v452 = vsel %vm450, 1, 0
        %v453 = vcvt.s32.f32 %v451
        %v454 = vcvt.s32.f32 %v452
        %v455 = vsel %vm392, %v453, -inf
        %456 = vmax.xlane.f32.xlu0 %v455
        %v457 = vpop.xlane.xlu0 %456
        %v458 = vsel %vm392, %v454, -inf
        %459 = vmax.xlane.f32.xlu0 %v458
        %v460 = vpop.xlane.xlu0 %459
        %v463 = vlaneseq
        %v464 = vand.u32 %v463, 127
        %v465 = vlaneseq
        %v466 = vshrl.u32 %v465, 7
        %v467 = vsub.s32 %v464, %v466
        %v468 = vrot.slane %v457, %v467
        %v469 = vadd.s32 %v464, 4294967288
        %v470 = vlaneseq
        %v471 = vshrl.u32 %v470, 7
        %v472 = vsub.s32 %v469, %v471
        %v473 = vrot.slane %v460, %v472
        %vm474 = vcmask 130112
        %v475 = vsel %vm474, %v473, %v468
        %vm477 = vcmask 122880
        %478 = vst.msk [vmem:[%s196] sm:$0x1] %vm477, %v475
        %v479 = vmax.f32 %v455, %v458
        %v480 = vrot.slane %v479, 4
        %v481 = vmax.f32 %v479, %v480
        %v482 = vrot.slane %v481, 2
        %v483 = vmax.f32 %v481, %v482
        %v484 = vrot.slane %v483, 1
        %v485 = vmax.f32 %v483, %v484
        %vm486 = vcmask 24576
        %487 = vst.msk [vmem:[%s202] sm:$0x1] %vm486, %v485
        %s488 = sand.u32 %s98, 1
        %s489 = scalar_lea.sflag [#allocation3], %s488
        %s490 = sand.u32 %s98, 1
        %s491 = scalar_lea.vmem [#allocation2], %s490
        %s492 = sand.u32 %s124, 1
        %s493 = scalar_lea.sflag [#allocation5], %s492
        %s494 = sand.u32 %s124, 1
        %s495 = scalar_lea.vmem [#allocation4], %s494
        // Predicated region
        $region33: #{tpu_custom_call.1} parent=31 // pred_check
          %p496 = pneg %p108
        $region34: #{tpu_custom_call.1} parent=31 // pred_check_branch
          %498 = sbr.rel (%p496) target = $region36
        $region35: #{tpu_custom_call.1} parent=31 // pred_region
          %s500 = ssub.s32 16, 16
          %501 = vsyncadd %s489, %s500
          %s502 = smul.addr %s22, 16
          %s503 = scalar_lea.hbm %s3, %s502
          %s505 = sshll.u32 %s491, 4
          %s506 = int_to_ptr.vmem [resolvable:$true] %s505
          %508 = dma.vmem_to_hbm [thread:$0]  %s506, 16, %s503, %s489
        $region36: #{tpu_custom_call.1} parent=31 // pred_fallthru
          _
        // Predicated region
        $region37: #{tpu_custom_call.1} parent=31 // pred_check
          %p509 = pneg %p134
        $region38: #{tpu_custom_call.1} parent=31 // pred_check_branch
          %511 = sbr.rel (%p509) target = $region40
        $region39: #{tpu_custom_call.1} parent=31 // pred_region
          %s513 = ssub.s32 16, 16
          %514 = vsyncadd %s493, %s513
          %s515 = smul.addr %s22, 16
          %s516 = scalar_lea.hbm %s4, %s515
          %s518 = sshll.u32 %s495, 4
          %s519 = int_to_ptr.vmem [resolvable:$true] %s518
          %521 = dma.vmem_to_hbm [thread:$0]  %s519, 16, %s516, %s493
        $region40: #{tpu_custom_call.1} parent=31 // pred_fallthru
          _
      $region32: #{tpu_custom_call.1} parent=5 // pred_fallthru
        _
      %p522 = scmp.le.s32.totalorder 2, %s17
      // Predicated region
      $region41: #{tpu_custom_call.1} parent=5 // pred_check
        %p523 = pneg %p522
      $region42: #{tpu_custom_call.1} parent=5 // pred_check_branch
        %525 = sbr.rel (%p523) target = $region44
      $region43: #{tpu_custom_call.1} parent=5 // pred_region
        %s526 = ssub.s32 %s17, 2
        // Predicated region
        $region45: #{tpu_custom_call.1} parent=43 // pred_check
          %p527 = pneg %p114
        $region46: #{tpu_custom_call.1} parent=43 // pred_check_branch
          %529 = sbr.rel (%p527) target = $region48
        $region47: #{tpu_custom_call.1} parent=43 // pred_region
          %s530 = sand.u32 %s99, 1
          %s531 = scalar_lea.sflag [#allocation3], %s530
          %s532 = sand.u32 %s99, 1
          %s533 = scalar_lea.vmem [#allocation2], %s532
          %534 = dma.done %s531, 16
        $region48: #{tpu_custom_call.1} parent=43 // pred_fallthru
          _
        // Predicated region
        $region49: #{tpu_custom_call.1} parent=43 // pred_check
          %p535 = pneg %p140
        $region50: #{tpu_custom_call.1} parent=43 // pred_check_branch
          %537 = sbr.rel (%p535) target = $region52
        $region51: #{tpu_custom_call.1} parent=43 // pred_region
          %s538 = sand.u32 %s125, 1
          %s539 = scalar_lea.sflag [#allocation5], %s538
          %s540 = sand.u32 %s125, 1
          %s541 = scalar_lea.vmem [#allocation4], %s540
          %542 = dma.done %s539, 16
        $region52: #{tpu_custom_call.1} parent=43 // pred_fallthru
          _
      $region44: #{tpu_custom_call.1} parent=5 // pred_fallthru
        _
    $region6: #{tpu_custom_call.1} parent=1 // loop_footer
      %s21 = sadd.s32 1, %s17
    $region7: #{tpu_custom_call.1} parent=1 // loop_footer_branch
      %16 = sbr.rel target = $region3
    $region8: #{tpu_custom_call.1} parent=1 // loop_exit
      _
    %543 = vsyncpa [#allocation3], 1
    %s544 = scalar_lea.sflag [#allocation3], 1
    %545 = vsyncpa %s544, 1
    %546 = vsyncpa [#allocation5], 1
    %s547 = scalar_lea.sflag [#allocation5], 1
    %548 = vsyncpa %s547, 1

</llo_original>
